<compile_context>
chip_gen: v7x
topology: tpu7x:2x2x1
jax: 0.10.0
libtpu: 0.0.40
codegen_flags: <defaults>
</compile_context>

<pallas_src>
import functools

import jax
import jax.numpy as jnp
from jax import lax
from jax.experimental import pallas as pl
from jax.experimental.pallas import tpu as pltpu


def _self_attn_kernel(xq_ref, x_ref, at_ref, wst_ref, bv_ref, gamma_ref, o_ref,
                      *, n_valid):
    """One (batch, query-tile) step.

    xq_ref:    (1, C, TQ)  f32   query slice of x (also used for the residual)
    x_ref:     (1, C, N)   bf16  full x, resident across the query-tile axis
    at_ref:    (C, C)      bf16  (Wq^T Wk)^T  pre-fused on the host
    wst_ref:   (C+1, C)    bf16  fused [Wv ; bq^T Wk]
    bv_ref:    (C, 1)      f32   value bias (broadcast along lanes)
    gamma_ref: (1, 1)      f32   scalar in SMEM
    o_ref:     (1, C, TQ)  f32   output column tile (lane-dense store)
    """
    C = at_ref.shape[0]
    n_pad = x_ref.shape[2]

    x_bf = x_ref[0]                                # (C, N) bf16
    x_q = xq_ref[0]                                # (C, TQ) f32
    xq_bf = x_q.astype(jnp.bfloat16)

    # g = A^T @ x_q -> (C, TQ); cheap (contraction depth C over a TQ-wide tile).
    g = jnp.dot(at_ref[...], xq_bf, preferred_element_type=jnp.float32)

    # Fused left projection [Wv ; bq^T Wk] @ x -> (C+1, N), f32 accumulation.
    p = jnp.dot(wst_ref[...], x_bf, preferred_element_type=jnp.float32)
    v_bf = (p[0:C, :] + bv_ref[...]).astype(jnp.bfloat16)   # (C, N) value tile
    r = p[C:C + 1, :]                                        # (1, N) j-varying bias

    # energy[i, j] = x_qi^T (Wq^T Wk) x_j + (bq^T Wk) x_j  -> (TQ, N)
    # Contract the channel (sublane) axis of BOTH operands: no materialized x^T
    # and no lane-sparse (N, C) intermediate.
    energy = lax.dot_general(
        g.astype(jnp.bfloat16), x_bf,
        dimension_numbers=(((0,), (0,)), ((), ())),
        preferred_element_type=jnp.float32) + r              # (TQ, N) f32

    if n_valid < n_pad:  # static: mask padded key columns out of the softmax
        col = lax.broadcasted_iota(jnp.int32, (1, n_pad), 1)
        energy = jnp.where(col < n_valid, energy, -1e30)

    # Row softmax over the key axis, all statistics in f32.
    m = jnp.max(energy, axis=-1, keepdims=True)
    e = jnp.exp(energy - m)
    attn = e * pl.reciprocal(jnp.sum(e, axis=-1, keepdims=True), approx=True)

    # out[c, i] = sum_j v[c, j] * attn[i, j]  ==  V @ attn^T
    # (rhs-transposed contraction; full K = N depth on the MXU, no attn^T copy).
    out = lax.dot_general(v_bf, attn.astype(jnp.bfloat16),
                          dimension_numbers=(((1,), (1,)), ((), ())),
                          preferred_element_type=jnp.float32)  # (C, TQ) f32

    o_ref[0] = gamma_ref[0, 0] * out + x_q


def self_attention(x_nchw, wq, bq, wk, bk, wv, bv, gamma, *, tq=None):
    """x_nchw: (B, C, H, W) float32.
    wq/wk: (C//8, C), wv: (C, C) — PyTorch 1x1-conv weights (kernel dims squeezed).

    bk only adds per-row constants to the pre-softmax energy, which softmax
    cancels exactly, so it does not appear in the fused kernel parameters.
    """
    B, C, H, W = x_nchw.shape
    N = H * W
    n_pad = ((N + 127) // 128) * 128          # lane-dense loads/stores
    if tq is None:
        # 256-multiples feed the 2x256x256 MXU on v6e/v7x; 128 keeps more grid
        # steps (pipelining / core balance) for small spatial sizes.
        tq = 256 if (n_pad % 256 == 0 and n_pad > 256) else 128
    assert n_pad % tq == 0

    x_flat = x_nchw.reshape(B, C, N).astype(jnp.float32)   # free reshape, no transpose
    if n_pad != N:
        x_flat = jnp.pad(x_flat, ((0, 0), (0, 0), (0, n_pad - N)))
    x_bf16 = x_flat.astype(jnp.bfloat16)                   # resident matmul operand

    wq = jnp.asarray(wq, jnp.float32)
    wk = jnp.asarray(wk, jnp.float32)
    wv = jnp.asarray(wv, jnp.float32)
    bq = jnp.asarray(bq, jnp.float32)
    bv = jnp.asarray(bv, jnp.float32)

    a_t = (wk.T @ wq).astype(jnp.bfloat16)                  # (C, C) = (Wq^T Wk)^T
    wrow = (wk.T @ bq).reshape(1, C)                        # (1, C) = bq^T Wk
    w_stack = jnp.concatenate([wv, wrow], axis=0).astype(jnp.bfloat16)  # (C+1, C)
    bv_col = bv.reshape(C, 1)
    gamma_r = jnp.asarray(gamma, jnp.float32).reshape(1, 1)

    kernel = functools.partial(_self_attn_kernel, n_valid=N)

    out_flat = pl.pallas_call(
        kernel,
        out_shape=jax.ShapeDtypeStruct((B, C, n_pad), jnp.float32),
        grid_spec=pltpu.PrefetchScalarGridSpec(
            num_scalar_prefetch=0,
            grid=(B, n_pad // tq),
            in_specs=[
                pl.BlockSpec((1, C, tq), lambda b, q: (b, 0, q)),      # query slice (f32)
                pl.BlockSpec((1, C, n_pad), lambda b, q: (b, 0, 0)),   # full x (bf16), resident over q
                pl.BlockSpec((C, C), lambda b, q: (0, 0)),             # (Wq^T Wk)^T
                pl.BlockSpec((C + 1, C), lambda b, q: (0, 0)),         # [Wv ; bq^T Wk]
                pl.BlockSpec((C, 1), lambda b, q: (0, 0)),             # bv column
                pl.BlockSpec(memory_space=pltpu.MemorySpace.SMEM),     # gamma scalar
            ],
            out_specs=pl.BlockSpec((1, C, tq), lambda b, q: (b, 0, q)),
        ),
        compiler_params=pltpu.CompilerParams(
            # Independent (batch, query-tile) steps -> both axes parallel so the
            # two TensorCores stay balanced even when B is 1 or odd.
            dimension_semantics=("parallel", "parallel"),
            # Above v5e's 16 MiB scoped default, safely below v7x's 64 MiB VMEM.
            vmem_limit_bytes=48 * 1024 * 1024,
        ),
    )(x_flat, x_bf16, a_t, w_stack, bv_col, gamma_r)

    if n_pad != N:
        out_flat = out_flat[:, :, :N]
    return out_flat.reshape(B, C, H, W)


def _reference(x_nchw, wq, bq, wk, bk, wv, bv, gamma):
    """Pure-JAX f32 reference mirroring the PyTorch forward exactly (all bias terms)."""
    B, C, H, W = x_nchw.shape
    N = H * W
    hp = lax.Precision.HIGHEST
    x = x_nchw.reshape(B, C, N)
    q = jnp.einsum('oc,bcn->bon', wq, x, precision=hp) + bq[None, :, None]
    k = jnp.einsum('oc,bcn->bon', wk, x, precision=hp) + bk[None, :, None]
    v = jnp.einsum('oc,bcn->bon', wv, x, precision=hp) + bv[None, :, None]
    query = jnp.transpose(q, (0, 2, 1))
    energy = jnp.einsum('bnc,bcm->bnm', query, k, precision=hp)
    attn = jax.nn.softmax(energy, axis=2)
    out = jnp.einsum('bcn,bmn->bcm', v, attn, precision=hp)
    return gamma * out.reshape(B, C, H, W) + x_nchw


if __name__ == "__main__":
    key = jax.random.PRNGKey(0)
    # in_channels must be >= 8 (C // 8 >= 1); H*W = 256 keeps the lane axis dense.
    B, C, H, W = 2, 32, 16, 16
    C8 = C // 8

    ks = jax.random.split(key, 7)
    x = jax.random.normal(ks[0], (B, C, H, W), dtype=jnp.float32)
    wq = 0.1 * jax.random.normal(ks[1], (C8, C), dtype=jnp.float32)
    bq = 0.1 * jax.random.normal(ks[2], (C8,), dtype=jnp.float32)
    wk = 0.1 * jax.random.normal(ks[3], (C8, C), dtype=jnp.float32)
    bk = 0.1 * jax.random.normal(ks[4], (C8,), dtype=jnp.float32)
    wv = 0.1 * jax.random.normal(ks[5], (C, C), dtype=jnp.float32)
    bv = 0.1 * jax.random.normal(ks[6], (C,), dtype=jnp.float32)
    # PyTorch initializes gamma to zero; use a nonzero value so attention is exercised.
    gamma = jnp.float32(0.5)

    out = self_attention(x, wq, bq, wk, bk, wv, bv, gamma)
    out = jax.block_until_ready(out)

    ref = _reference(x, wq, bq, wk, bk, wv, bv, gamma)
    assert out.shape == (B, C, H, W)
    # bf16 MXU operands + approx reciprocal -> slightly looser tolerance than f32.
    assert jnp.allclose(out, ref, atol=2e-2, rtol=2e-2), "mismatch vs reference"

    print("KERNEL_OK")
</pallas_src>

<mosaic_0001>
module attributes {stable_mosaic.version = 11 : i64} {
  func.func @_self_attn_kernel(%arg0: i32, %arg1: i32, %arg2: memref<1x32x128xf32, #tpu.memory_space<vmem>>, %arg3: memref<1x32x256xbf16, #tpu.memory_space<vmem>>, %arg4: memref<32x32xbf16, #tpu.memory_space<vmem>>, %arg5: memref<33x32xbf16, #tpu.memory_space<vmem>>, %arg6: memref<32x1xf32, #tpu.memory_space<vmem>>, %arg7: memref<1x1xf32, #tpu.memory_space<smem>>, %arg8: memref<1x32x128xf32, #tpu.memory_space<vmem>>) attributes {dimension_semantics = [#tpu.dimension_semantics<parallel>, #tpu.dimension_semantics<parallel>], iteration_bounds = array<i64: 2, 2>, scalar_prefetch = 0 : i64, scratch_operands = 0 : i64, tpu.core_type = #tpu.core_type<tc>, window_params = [{transform_indices = @transform_0, window_bounds = array<i64: 1, 32, 128>}, {transform_indices = @transform_1, window_bounds = array<i64: 1, 32, 256>}, {pipeline_mode = #tpu.pipeline_mode<synchronous>, transform_indices = @transform_2, window_bounds = array<i64: 32, 32>}, {pipeline_mode = #tpu.pipeline_mode<synchronous>, transform_indices = @transform_3, window_bounds = array<i64: 33, 32>}, {pipeline_mode = #tpu.pipeline_mode<synchronous>, transform_indices = @transform_4, window_bounds = array<i64: 32, 1>}, {transform_indices = @transform_5, window_bounds = array<i64: 1, 1>}, {transform_indices = @transform_6, window_bounds = array<i64: 1, 32, 128>}]} {
    %c0 = arith.constant 0 : index
    %c0_0 = arith.constant 0 : index
    %c0_1 = arith.constant 0 : index
    %0 = vector.load %arg3[%c0, %c0_0, %c0_1] : memref<1x32x256xbf16, #tpu.memory_space<vmem>>, vector<1x32x256xbf16>
    %1 = vector.shape_cast %0 : vector<1x32x256xbf16> to vector<32x256xbf16>
    %c0_2 = arith.constant 0 : index
    %c0_3 = arith.constant 0 : index
    %c0_4 = arith.constant 0 : index
    %2 = vector.load %arg2[%c0_2, %c0_3, %c0_4] : memref<1x32x128xf32, #tpu.memory_space<vmem>>, vector<1x32x128xf32>
    %3 = vector.shape_cast %2 : vector<1x32x128xf32> to vector<32x128xf32>
    %4 = arith.truncf %3 : vector<32x128xf32> to vector<32x128xbf16>
    %c0_5 = arith.constant 0 : index
    %c0_6 = arith.constant 0 : index
    %5 = vector.load %arg4[%c0_5, %c0_6] : memref<32x32xbf16, #tpu.memory_space<vmem>>, vector<32x32xbf16>
    %cst = arith.constant dense<0.000000e+00> : vector<32x128xf32>
    %6 = tpu.matmul %5, %4, %cst {dimension_numbers = #tpu.dot_dimension_numbers<[1], [0], [0], [1], [0, 0, 1, 1], [], []>} : vector<32x32xbf16>, vector<32x128xbf16>, vector<32x128xf32> -> vector<32x128xf32>
    %c0_7 = arith.constant 0 : index
    %c0_8 = arith.constant 0 : index
    %7 = vector.load %arg5[%c0_7, %c0_8] : memref<33x32xbf16, #tpu.memory_space<vmem>>, vector<33x32xbf16>
    %cst_9 = arith.constant dense<0.000000e+00> : vector<33x256xf32>
    %8 = tpu.matmul %7, %1, %cst_9 {dimension_numbers = #tpu.dot_dimension_numbers<[1], [0], [0], [1], [0, 0, 1, 1], [], []>} : vector<33x32xbf16>, vector<32x256xbf16>, vector<33x256xf32> -> vector<33x256xf32>
    %9 = vector.extract_strided_slice %8 {offsets = [0, 0], sizes = [32, 256], strides = [1, 1]} : vector<33x256xf32> to vector<32x256xf32>
    %c0_10 = arith.constant 0 : index
    %c0_11 = arith.constant 0 : index
    %10 = vector.load %arg6[%c0_10, %c0_11] : memref<32x1xf32, #tpu.memory_space<vmem>>, vector<32x1xf32>
    %11 = vector.broadcast %10 : vector<32x1xf32> to vector<32x256xf32>
    %12 = arith.addf %9, %11 : vector<32x256xf32>
    %13 = arith.truncf %12 : vector<32x256xf32> to vector<32x256xbf16>
    %14 = vector.extract_strided_slice %8 {offsets = [32, 0], sizes = [1, 256], strides = [1, 1]} : vector<33x256xf32> to vector<1x256xf32>
    %15 = arith.truncf %6 : vector<32x128xf32> to vector<32x128xbf16>
    %cst_12 = arith.constant dense<0.000000e+00> : vector<128x256xf32>
    %16 = tpu.matmul %15, %1, %cst_12 {dimension_numbers = #tpu.dot_dimension_numbers<[0], [0], [1], [1], [0, 1, 1, 1], [], []>} : vector<32x128xbf16>, vector<32x256xbf16>, vector<128x256xf32> -> vector<128x256xf32>
    %17 = vector.broadcast %14 : vector<1x256xf32> to vector<128x256xf32>
    %18 = arith.addf %16, %17 : vector<128x256xf32>
    %cst_13 = arith.constant dense<0xFF800000> : vector<128xf32>
    %19 = vector.multi_reduction <maximumf>, %18, %cst_13 [1] : vector<128x256xf32> to vector<128xf32>
    %20 = vector.shape_cast %19 : vector<128xf32> to vector<128x1xf32>
    %21 = vector.broadcast %20 : vector<128x1xf32> to vector<128x256xf32>
    %22 = arith.subf %18, %21 : vector<128x256xf32>
    %23 = math.exp %22 : vector<128x256xf32>
    %cst_14 = arith.constant dense<0.000000e+00> : vector<128xf32>
    %24 = vector.multi_reduction <add>, %23, %cst_14 [1] : vector<128x256xf32> to vector<128xf32>
    %25 = vector.shape_cast %24 : vector<128xf32> to vector<128x1xf32>
    %26 = tpu.reciprocal %25 {approx = true} : vector<128x1xf32> -> vector<128x1xf32>
    %27 = vector.broadcast %26 : vector<128x1xf32> to vector<128x256xf32>
    %28 = arith.mulf %23, %27 : vector<128x256xf32>
    %29 = arith.truncf %28 : vector<128x256xf32> to vector<128x256xbf16>
    %cst_15 = arith.constant dense<0.000000e+00> : vector<32x128xf32>
    %30 = tpu.matmul %13, %29, %cst_15 {dimension_numbers = #tpu.dot_dimension_numbers<[1], [1], [0], [0], [0, 0, 1, 0], [], []>} : vector<32x256xbf16>, vector<128x256xbf16>, vector<32x128xf32> -> vector<32x128xf32>
    %c0_16 = arith.constant 0 : index
    %c0_17 = arith.constant 0 : index
    %31 = memref.load %arg7[%c0_16, %c0_17] : memref<1x1xf32, #tpu.memory_space<smem>>
    %32 = vector.broadcast %31 : f32 to vector<32x128xf32>
    %33 = arith.mulf %32, %30 : vector<32x128xf32>
    %34 = arith.addf %33, %3 : vector<32x128xf32>
    %c0_18 = arith.constant 0 : index
    %c0_19 = arith.constant 0 : index
    %c0_20 = arith.constant 0 : index
    %35 = vector.load %arg8[%c0_18, %c0_19, %c0_20] : memref<1x32x128xf32, #tpu.memory_space<vmem>>, vector<1x32x128xf32>
    %36 = vector.shape_cast %35 : vector<1x32x128xf32> to vector<32x128xf32>
    %37 = vector.shape_cast %34 : vector<32x128xf32> to vector<1x32x128xf32>
    tpu.vector_store %arg8[%c0_18, %c0_19, %c0_20], %37 {strides = array<i32>} : memref<1x32x128xf32, #tpu.memory_space<vmem>>, vector<1x32x128xf32>,
    return
  }
  func.func @transform_0(%arg0: i32, %arg1: i32) -> (i32, i32, i32) {
    %c0_i32 = arith.constant 0 : i32
    %c0_i32_0 = arith.constant 0 : i32
    return %arg0, %c0_i32, %arg1 : i32, i32, i32
  }
  func.func @transform_1(%arg0: i32, %arg1: i32) -> (i32, i32, i32) {
    %c0_i32 = arith.constant 0 : i32
    %c0_i32_0 = arith.constant 0 : i32
    %c0_i32_1 = arith.constant 0 : i32
    return %arg0, %c0_i32, %c0_i32_0 : i32, i32, i32
  }
  func.func @transform_2(%arg0: i32, %arg1: i32) -> (i32, i32) {
    %c0_i32 = arith.constant 0 : i32
    %c0_i32_0 = arith.constant 0 : i32
    %c0_i32_1 = arith.constant 0 : i32
    return %c0_i32, %c0_i32_0 : i32, i32
  }
  func.func @transform_3(%arg0: i32, %arg1: i32) -> (i32, i32) {
    %c0_i32 = arith.constant 0 : i32
    %c0_i32_0 = arith.constant 0 : i32
    %c0_i32_1 = arith.constant 0 : i32
    return %c0_i32, %c0_i32_0 : i32, i32
  }
  func.func @transform_4(%arg0: i32, %arg1: i32) -> (i32, i32) {
    %c0_i32 = arith.constant 0 : i32
    %c0_i32_0 = arith.constant 0 : i32
    %c0_i32_1 = arith.constant 0 : i32
    return %c0_i32, %c0_i32_0 : i32, i32
  }
  func.func @transform_5(%arg0: i32, %arg1: i32) -> (i32, i32) {
    %c0_i32 = arith.constant 0 : i32
    %c0_i32_0 = arith.constant 0 : i32
    %c0_i32_1 = arith.constant 0 : i32
    return %c0_i32, %c0_i32_0 : i32, i32
  }
  func.func @transform_6(%arg0: i32, %arg1: i32) -> (i32, i32, i32) {
    %c0_i32 = arith.constant 0 : i32
    %c0_i32_0 = arith.constant 0 : i32
    return %arg0, %c0_i32, %arg1 : i32, i32, i32
  }
}

</mosaic_0001>

<llo_original>
// kernel: tpu_custom_call.1
$region0: #{tpu_custom_call.1}
  #allocation0 [shape = 'u32[]', space=smem, size = 0x4, offset = 0x4, fixed_abs, tag = 'smem constant byte address 0x4 - core index']
  #allocation1 [shape = 'u32[144,128]{1,0:T(1,128)}', space=vmem, size = 0x12000, scoped, tag = 'internal scratch']
  #allocation2 [shape = 'f32[1,1]{1,0:T(1,128)S(6)}', space=smem, size = 0x200, scoped, tag = 'scoped memory for tpu_custom_call.1']
  %s0 = inlined_call_operand.hbm [shape: f32[2,32,256], index: 0, kind: input, shape index: {}]
  %s1 = inlined_call_operand.vmem [shape: bf16[2,32,256], index: 1, kind: input, shape index: {}]
  %s2 = inlined_call_operand.vmem [shape: bf16[32,32], index: 2, kind: input, shape index: {}]
  %s3 = inlined_call_operand.vmem [shape: bf16[33,32], index: 3, kind: input, shape index: {}]
  %s4 = inlined_call_operand.vmem [shape: f32[32,1], index: 4, kind: input, shape index: {}]
  %s5 = inlined_call_operand.<no memory space> [shape: f32[1,1], index: 5, kind: input, shape index: {}]
  %s6 = inlined_call_operand.hbm [shape: f32[2,32,256], index: 6, kind: output, shape index: {}]
  %s7 = sld [smem:[#allocation0]]
  $region61: #{tpu_custom_call.1} parent=0
    _
  %s9 = ssub.s32 1, %s7
  %s10 = scalar_select 0, %s9, %s7
  %11 = sst [smem:[#allocation2]] %s5
  $region1: #{tpu_custom_call.1} parent=0
    #allocation3 [shape = 'u8[32768]{0}', space=vmem, size = 0x8000, scoped, tag = 'input window, operand 0']
    #allocation4 [shape = 's32[2]{0}', space=sflag, size = 0x8, scoped, tag = 'scoped memory for tpu_custom_call.1']
    #allocation5 [shape = 's32[2]{0}', space=sflag, size = 0x8, scoped, tag = 'scoped memory for tpu_custom_call.1']
    #allocation6 [shape = 'u8[32768]{0}', space=vmem, size = 0x8000, scoped, tag = 'output window, operand 0']
    %12 = vsyncpa [#allocation4], 0
    %s13 = scalar_lea.sflag [#allocation4], 1
    %14 = vsyncpa %s13, 0
    %15 = vsyncpa [#allocation5], 0
    %s16 = scalar_lea.sflag [#allocation5], 1
    %17 = vsyncpa %s16, 0
    loop: start=0, step=1, limit=6
    $region2: #{tpu_custom_call.1} parent=1 // loop_pre_header
      _
    $region3: #{tpu_custom_call.1} parent=1 // loop_header
      %s19 = sphi 0, %s23
      %p20 = scmp.ge.s32.totalorder %s19, 6
      %s26 = sphi 0, %s38
      %s27 = sphi 0, %s34
      %s28 = sphi 0, %s26
      %s29 = sphi 0, %s27
      %s30 = sphi 0, %s28
      %s31 = sphi 0, %s29
      %s43 = sphi 0, %s45
      %s46 = sphi 0, %s43
      %s47 = sphi 0, %s46
      %s63 = sphi 0, %s47
      %s69 = sphi 0, %s71
      %s72 = sphi 0, %s69
      %s73 = sphi 0, %s72
      %s89 = sphi 0, %s73
      %s93 = sphi 0, %s93
      %s95 = sphi 0, %s93
      %s96 = sphi 0, %s95
      %s110 = sphi 0, %s96
      %s114 = sphi 0, %s114
      %s116 = sphi 0, %s114
      %s117 = sphi 0, %s116
      %s131 = sphi 0, %s117
      %s135 = sphi 0, %s135
      %s137 = sphi 0, %s135
      %s138 = sphi 0, %s137
      %s152 = sphi 0, %s138
      %s156 = sphi 0, %s156
      %s158 = sphi 0, %s156
      %s159 = sphi 0, %s158
      %s173 = sphi 0, %s159
      %s181 = sphi 0, %s183
      %s184 = sphi 0, %s181
      %s185 = sphi 0, %s184
      %s201 = sphi 0, %s185
    $region4: #{tpu_custom_call.1} parent=1 // loop_header_branch
      %22 = sbr.rel (%p20) target = $region8
    $region5: #{tpu_custom_call.1} parent=1 // loop_body
      %s24 = ssub.s32 %s19, 1
      %s25 = ssub.s32 %s19, 2
      %s32 = sadd.s32 1, %s27
      %p33 = scmp.ge.s32.totalorder %s32, 2
      %s34 = scalar_select %p33, 0, %s32
      %s35 = sadd.s32 1, %s26
      %s36 = scalar_select %p33, %s35, %s26
      %p37 = scmp.ge.s32.totalorder %s36, 2
      %s38 = scalar_select %p37, 0, %s36
      %s39 = ssub.s32 %s26, %s38
      %s40 = ssub.s32 %s27, %s34
      %s41 = sor.u32 %s39, %s40
      %p42 = scmp.eq.s32.totalorder %s41, 0
      %s44 = sadd.s32 %s43, 1
      %s45 = scalar_select %p42, %s43, %s44
      %p48 = pneg %p42
      %p49 = scmp.eq.s32.totalorder %s19, 3
      %p50 = por %p48, %p49
      %p51 = scmp.ne.s32.totalorder %s43, %s46
      %p52 = scmp.eq.s32.totalorder %s19, 0
      %p53 = por %p51, %p52
      %p54 = scmp.ne.s32.totalorder %s43, %s46
      %p55 = scmp.eq.s32.totalorder %s24, 3
      %p56 = por %p54, %p55
      %p57 = scmp.ne.s32.totalorder %s46, %s47
      %p58 = scmp.eq.s32.totalorder %s24, 0
      %p59 = por %p57, %p58
      %p60 = scmp.ne.s32.totalorder %s46, %s47
      %p61 = scmp.eq.s32.totalorder %s25, 3
      %p62 = por %p60, %p61
      %p64 = scmp.ne.s32.totalorder %s47, %s63
      %p65 = scmp.eq.s32.totalorder %s25, 0
      %p66 = por %p64, %p65
      %s67 = ssub.s32 %s26, %s38
      %p68 = scmp.eq.s32.totalorder %s67, 0
      %s70 = sadd.s32 %s69, 1
      %s71 = scalar_select %p68, %s69, %s70
      %p74 = pneg %p68
      %p75 = scmp.eq.s32.totalorder %s19, 3
      %p76 = por %p74, %p75
      %p77 = scmp.ne.s32.totalorder %s69, %s72
      %p78 = scmp.eq.s32.totalorder %s19, 0
      %p79 = por %p77, %p78
      %p80 = scmp.ne.s32.totalorder %s69, %s72
      %p81 = scmp.eq.s32.totalorder %s24, 3
      %p82 = por %p80, %p81
      %p83 = scmp.ne.s32.totalorder %s72, %s73
      %p84 = scmp.eq.s32.totalorder %s24, 0
      %p85 = por %p83, %p84
      %p86 = scmp.ne.s32.totalorder %s72, %s73
      %p87 = scmp.eq.s32.totalorder %s25, 3
      %p88 = por %p86, %p87
      %p90 = scmp.ne.s32.totalorder %s73, %s89
      %p91 = scmp.eq.s32.totalorder %s25, 0
      %p92 = por %p90, %p91
      %s94 = sadd.s32 %s93, 1
      %p97 = scmp.eq.s32.totalorder %s19, 3
      %p98 = scmp.ne.s32.totalorder %s93, %s95
      %p99 = scmp.eq.s32.totalorder %s19, 0
      %p100 = por %p98, %p99
      %p101 = scmp.ne.s32.totalorder %s93, %s95
      %p102 = scmp.eq.s32.totalorder %s24, 3
      %p103 = por %p101, %p102
      %p104 = scmp.ne.s32.totalorder %s95, %s96
      %p105 = scmp.eq.s32.totalorder %s24, 0
      %p106 = por %p104, %p105
      %p107 = scmp.ne.s32.totalorder %s95, %s96
      %p108 = scmp.eq.s32.totalorder %s25, 3
      %p109 = por %p107, %p108
      %p111 = scmp.ne.s32.totalorder %s96, %s110
      %p112 = scmp.eq.s32.totalorder %s25, 0
      %p113 = por %p111, %p112
      %s115 = sadd.s32 %s114, 1
      %p118 = scmp.eq.s32.totalorder %s19, 3
      %p119 = scmp.ne.s32.totalorder %s114, %s116
      %p120 = scmp.eq.s32.totalorder %s19, 0
      %p121 = por %p119, %p120
      %p122 = scmp.ne.s32.totalorder %s114, %s116
      %p123 = scmp.eq.s32.totalorder %s24, 3
      %p124 = por %p122, %p123
      %p125 = scmp.ne.s32.totalorder %s116, %s117
      %p126 = scmp.eq.s32.totalorder %s24, 0
      %p127 = por %p125, %p126
      %p128 = scmp.ne.s32.totalorder %s116, %s117
      %p129 = scmp.eq.s32.totalorder %s25, 3
      %p130 = por %p128, %p129
      %p132 = scmp.ne.s32.totalorder %s117, %s131
      %p133 = scmp.eq.s32.totalorder %s25, 0
      %p134 = por %p132, %p133
      %s136 = sadd.s32 %s135, 1
      %p139 = scmp.eq.s32.totalorder %s19, 3
      %p140 = scmp.ne.s32.totalorder %s135, %s137
      %p141 = scmp.eq.s32.totalorder %s19, 0
      %p142 = por %p140, %p141
      %p143 = scmp.ne.s32.totalorder %s135, %s137
      %p144 = scmp.eq.s32.totalorder %s24, 3
      %p145 = por %p143, %p144
      %p146 = scmp.ne.s32.totalorder %s137, %s138
      %p147 = scmp.eq.s32.totalorder %s24, 0
      %p148 = por %p146, %p147
      %p149 = scmp.ne.s32.totalorder %s137, %s138
      %p150 = scmp.eq.s32.totalorder %s25, 3
      %p151 = por %p149, %p150
      %p153 = scmp.ne.s32.totalorder %s138, %s152
      %p154 = scmp.eq.s32.totalorder %s25, 0
      %p155 = por %p153, %p154
      %s157 = sadd.s32 %s156, 1
      %p160 = scmp.eq.s32.totalorder %s19, 3
      %p161 = scmp.ne.s32.totalorder %s156, %s158
      %p162 = scmp.eq.s32.totalorder %s19, 0
      %p163 = por %p161, %p162
      %p164 = scmp.ne.s32.totalorder %s156, %s158
      %p165 = scmp.eq.s32.totalorder %s24, 3
      %p166 = por %p164, %p165
      %p167 = scmp.ne.s32.totalorder %s158, %s159
      %p168 = scmp.eq.s32.totalorder %s24, 0
      %p169 = por %p167, %p168
      %p170 = scmp.ne.s32.totalorder %s158, %s159
      %p171 = scmp.eq.s32.totalorder %s25, 3
      %p172 = por %p170, %p171
      %p174 = scmp.ne.s32.totalorder %s159, %s173
      %p175 = scmp.eq.s32.totalorder %s25, 0
      %p176 = por %p174, %p175
      %s177 = ssub.s32 %s26, %s38
      %s178 = ssub.s32 %s27, %s34
      %s179 = sor.u32 %s177, %s178
      %p180 = scmp.eq.s32.totalorder %s179, 0
      %s182 = sadd.s32 %s181, 1
      %s183 = scalar_select %p180, %s181, %s182
      %p186 = pneg %p180
      %p187 = scmp.eq.s32.totalorder %s19, 3
      %p188 = por %p186, %p187
      %p189 = scmp.ne.s32.totalorder %s181, %s184
      %p190 = scmp.eq.s32.totalorder %s19, 0
      %p191 = por %p189, %p190
      %p192 = scmp.ne.s32.totalorder %s181, %s184
      %p193 = scmp.eq.s32.totalorder %s24, 3
      %p194 = por %p192, %p193
      %p195 = scmp.ne.s32.totalorder %s184, %s185
      %p196 = scmp.eq.s32.totalorder %s24, 0
      %p197 = por %p195, %p196
      %p198 = scmp.ne.s32.totalorder %s184, %s185
      %p199 = scmp.eq.s32.totalorder %s25, 3
      %p200 = por %p198, %p199
      %p202 = scmp.ne.s32.totalorder %s185, %s201
      %p203 = scmp.eq.s32.totalorder %s25, 0
      %p204 = por %p202, %p203
      %p205 = scmp.le.s32.totalorder 1, %s19
      %p206 = scmp.lt.s32.totalorder %s19, 5
      %p207 = pnand %p205, %p206
      %p208 = pneg %p207
      // Predicated region
      $region9: #{tpu_custom_call.1} parent=5 // pred_check
        _
      $region10: #{tpu_custom_call.1} parent=5 // pred_check_branch
        %210 = sbr.rel (%p207) target = $region12
      $region11: #{tpu_custom_call.1} parent=5 // pred_region
        %s211 = ssub.s32 %s19, 1
        // Predicated region
        $region13: #{tpu_custom_call.1} parent=11 // pred_check
          %p212 = pneg %p106
        $region14: #{tpu_custom_call.1} parent=11 // pred_check_branch
          %214 = sbr.rel (%p212) target = $region16
        $region15: #{tpu_custom_call.1} parent=11 // pred_region
          _
        $region16: #{tpu_custom_call.1} parent=11 // pred_fallthru
          _
        // Predicated region
        $region17: #{tpu_custom_call.1} parent=11 // pred_check
          %p215 = pneg %p127
        $region18: #{tpu_custom_call.1} parent=11 // pred_check_branch
          %217 = sbr.rel (%p215) target = $region20
        $region19: #{tpu_custom_call.1} parent=11 // pred_region
          _
        $region20: #{tpu_custom_call.1} parent=11 // pred_fallthru
          _
        // Predicated region
        $region21: #{tpu_custom_call.1} parent=11 // pred_check
          %p218 = pneg %p148
        $region22: #{tpu_custom_call.1} parent=11 // pred_check_branch
          %220 = sbr.rel (%p218) target = $region24
        $region23: #{tpu_custom_call.1} parent=11 // pred_region
          _
        $region24: #{tpu_custom_call.1} parent=11 // pred_fallthru
          _
        // Predicated region
        $region25: #{tpu_custom_call.1} parent=11 // pred_check
          %p221 = pneg %p169
        $region26: #{tpu_custom_call.1} parent=11 // pred_check_branch
          %223 = sbr.rel (%p221) target = $region28
        $region27: #{tpu_custom_call.1} parent=11 // pred_region
          _
        $region28: #{tpu_custom_call.1} parent=11 // pred_fallthru
          _
      $region12: #{tpu_custom_call.1} parent=5 // pred_fallthru
        _
      %p224 = scmp.lt.s32.totalorder %s19, 4
      // Predicated region
      $region29: #{tpu_custom_call.1} parent=5 // pred_check
        %p225 = pneg %p224
      $region30: #{tpu_custom_call.1} parent=5 // pred_check_branch
        %227 = sbr.rel (%p225) target = $region32
      $region31: #{tpu_custom_call.1} parent=5 // pred_region
        // Predicated region
        $region33: #{tpu_custom_call.1} parent=31 // pred_check
          %p228 = pneg %p53
        $region34: #{tpu_custom_call.1} parent=31 // pred_check_branch
          %230 = sbr.rel (%p228) target = $region36
        $region35: #{tpu_custom_call.1} parent=31 // pred_region
          %s231 = sand.u32 %s43, 1
          %s232 = scalar_lea.sflag [#allocation4], %s231
          %s233 = sand.u32 %s43, 1
          %s234 = smul.addr %s233, 32
          %s235 = scalar_lea.vmem [#allocation3], %s234
          %s237 = ssub.s32 512, 512
          %238 = vsyncadd %s232, %s237
          %s239 = smul.addr %s26, 8
          %s240 = sadd.s32 %s27, %s239
          %s241 = smul.addr %s240, 128
          %s242 = scalar_lea.hbm %s0, %s241
          %s243 = sshll.u32 %s235, 4
          %s244 = int_to_ptr.vmem [resolvable:$true] %s243
          %249 = dma.hbm_to_vmem [thread:$0]  %s242, 512, %s244, %s232, 256, 128, 8
        $region36: #{tpu_custom_call.1} parent=31 // pred_fallthru
          _
        // Predicated region
        $region37: #{tpu_custom_call.1} parent=31 // pred_check
          %p250 = pneg %p79
        $region38: #{tpu_custom_call.1} parent=31 // pred_check_branch
          %252 = sbr.rel (%p250) target = $region40
        $region39: #{tpu_custom_call.1} parent=31 // pred_region
          %p253 = scmp.lt.s32.totalorder %s26, 1
          %s254 = scalar_select %p253, %s26, 1
          %s255 = smul.addr %s254, 8
          %s256 = smul.addr %s255, 4
          %s257 = scalar_lea.vmem %s1, %s256
        $region40: #{tpu_custom_call.1} parent=31 // pred_fallthru
          _
      $region32: #{tpu_custom_call.1} parent=5 // pred_fallthru
        _
      %p258 = scmp.le.s32.totalorder 1, %s19
      %p259 = scmp.lt.s32.totalorder %s19, 5
      %p260 = pnand %p258, %p259
      %p261 = pneg %p260
      // Predicated region
      $region41: #{tpu_custom_call.1} parent=5 // pred_check
        _
      $region42: #{tpu_custom_call.1} parent=5 // pred_check_branch
        %263 = sbr.rel (%p260) target = $region44
      $region43: #{tpu_custom_call.1} parent=5 // pred_region
        %s264 = ssub.s32 %s19, 1
        %s265 = sand.u32 %s46, 1
        %s266 = scalar_lea.sflag [#allocation4], %s265
        %s267 = sand.u32 %s46, 1
        %s268 = smul.addr %s267, 32
        %s269 = scalar_lea.vmem [#allocation3], %s268
        // Predicated region
        $region45: #{tpu_custom_call.1} parent=43 // pred_check
          %p270 = pneg %p59
        $region46: #{tpu_custom_call.1} parent=43 // pred_check_branch
          %272 = sbr.rel (%p270) target = $region48
        $region47: #{tpu_custom_call.1} parent=43 // pred_region
          %273 = dma.done %s266, 512
        $region48: #{tpu_custom_call.1} parent=43 // pred_fallthru
          _
        %s274 = sand.u32 %s46, 1
        %s275 = scalar_lea.sflag [#allocation4], %s274
        %s276 = sand.u32 %s46, 1
        %s277 = smul.addr %s276, 32
        %s278 = scalar_lea.vmem [#allocation3], %s277
        %p279 = pneg %p59
        %p280 = pneg %p56
        %p281 = scmp.lt.s32.totalorder %s28, 1
        %s282 = scalar_select %p281, %s28, 1
        %s283 = smul.addr %s282, 8
        %s284 = smul.addr %s283, 4
        %s285 = scalar_lea.vmem %s1, %s284
        %p286 = pneg %p85
        %p287 = pneg %p82
        %p288 = pneg %p106
        %p289 = pneg %p103
        %p290 = pneg %p127
        %p291 = pneg %p124
        %p292 = pneg %p148
        %p293 = pneg %p145
        %p294 = pneg %p169
        %p295 = pneg %p166
        %p296 = pneg %p197
        %p297 = pneg %p194
        %s298 = sand.u32 %s184, 1
        %s299 = scalar_lea.sflag [#allocation5], %s298
        %s300 = sand.u32 %s184, 1
        %s301 = smul.addr %s300, 32
        %s302 = scalar_lea.vmem [#allocation6], %s301
        %p303 = scmp.lt.s32.totalorder %s28, 1
        %s304 = scalar_select %p303, %s28, 1
        %s305 = smul.addr %s304, 8
        %s306 = smul.addr %s305, 4
        %s307 = scalar_lea.vmem %s1, %s306
        %v309 = vld [vmem:[%s307] sm:$0xff]
        %v310 = vld [vmem:[%s307 + $0x8] sm:$0xff]
        %v311 = vld [vmem:[%s307 + $0x10] sm:$0xff]
        %v312 = vld [vmem:[%s307 + $0x18] sm:$0xff]
        %v313 = vld [vmem:[%s269] sm:$0xff]
        %v314 = vld [vmem:[%s269 + $0x8] sm:$0xff]
        %v315 = vld [vmem:[%s269 + $0x10] sm:$0xff]
        %v316 = vld [vmem:[%s269 + $0x18] sm:$0xff]
        %v317 = vpack.c.bf16 %v314, %v313
        %v318 = vpack.c.bf16 %v316, %v315
        %v319 = vld [vmem:[%s2] sm:$0xf]
        %v320 = vld [vmem:[%s2 + $0x4] sm:$0xf]
        %v321 = vld [vmem:[%s2 + $0x8] sm:$0xf]
        %v322 = vld [vmem:[%s2 + $0xc] sm:$0xf]
        %v327 = vunpack.c.l.b16 %v319
        %v328 = vunpack.c.l.b16 %v320
        %v329 = vunpack.c.l.b16 %v321
        %v330 = vunpack.c.l.b16 %v322
        %v331 = vpack.c.b16 %v328, %v327
        %v332 = vpack.c.b16 %v330, %v329
        %vm333 = vcmask 261120
        %v335 = vsel %vm333, %v331, 0
        %v338 = vsel %vm333, %v332, 0
        %340 = vmatprep.subr.bf16.mxu0 0
        %341 = vmatpush1.bf16.msra.mxu0 %v317
        %342 = vmatprep.subr.bf16.mxu0 0
        %343 = vmatpush1.bf16.msra.mxu0 %v318
        %344 = vmatprep.subr.bf16.mxu0 0
        %345 = vmatpush1.bf16.msra.mxu0 0
        %346 = vmatprep.subr.bf16.mxu0 0
        %347 = vmatpush1.bf16.msra.mxu0 0
        %348 = vmatprep.subr.bf16.mxu0 0
        %349 = vmatpush1.bf16.msra.mxu0 0
        %350 = vmatprep.subr.bf16.mxu0 0
        %351 = vmatpush1.bf16.msra.mxu0 0
        %352 = vmatprep.subr.bf16.mxu0 0
        %353 = vmatpush1.bf16.msra.mxu0 0
        %354 = vmatprep.subr.bf16.mxu0 0
        %355 = vmatpush1.bf16.msra.mxu0 0
        %356 = vmatprep.subr.bf16.mxu0 0
        %357 = vmatpush1.bf16.msra.mxu0 0
        %358 = vmatprep.subr.bf16.mxu0 0
        %359 = vmatpush1.bf16.msra.mxu0 0
        %360 = vmatprep.subr.bf16.mxu0 0
        %361 = vmatpush1.bf16.msra.mxu0 0
        %362 = vmatprep.subr.bf16.mxu0 0
        %363 = vmatpush1.bf16.msra.mxu0 0
        %364 = vmatprep.subr.bf16.mxu0 0
        %365 = vmatpush1.bf16.msra.mxu0 0
        %366 = vmatprep.subr.bf16.mxu0 0
        %367 = vmatpush1.bf16.msra.mxu0 0
        %368 = vmatprep.subr.bf16.mxu0 0
        %369 = vmatpush1.bf16.msra.mxu0 0
        %370 = vmatprep.subr.bf16.mxu0 0
        %371 = vmatpush1.bf16.msra.mxu0 0
        %372 = vmatprep.mubr.bf16.mxu0 0
        %373 = vmatmul.mubr.bf16.gmra.mrb[0].mxu0 %v335
        %v374 = vpop.f32.mrb[0].mxu0
        %v375 = vadd.f32 0.0, %v374
        %v376 = vpop.f32.mrb[0].mxu0
        %v377 = vpop.f32.mrb[0].mxu0
        %v378 = vadd.f32 0.0, %v377
        %v379 = vpop.f32.mrb[0].mxu0
        %380 = vmatprep.mubr.bf16.mxu0 0
        %381 = vmatmul.mubr.bf16.gmra.mrb[0].mxu0 %v338
        %v382 = vpop.f32.mrb[0].mxu0
        %v383 = vadd.f32 0.0, %v382
        %v384 = vpop.f32.mrb[0].mxu0
        %v385 = vpop.f32.mrb[0].mxu0
        %v386 = vadd.f32 0.0, %v385
        %v387 = vpop.f32.mrb[0].mxu0
        %388 = vdwg.mxu0
        %v389 = vld [vmem:[%s3] sm:$0xf]
        %v390 = vld [vmem:[%s3 + $0x4] sm:$0xf]
        %v391 = vld [vmem:[%s3 + $0x8] sm:$0xf]
        %v392 = vld [vmem:[%s3 + $0xc] sm:$0xf]
        %v393 = vld [vmem:[%s3 + $0x10] sm:$0x1]
        %v399 = vunpack.c.l.b16 %v389
        %v400 = vunpack.c.l.b16 %v390
        %v401 = vunpack.c.l.b16 %v391
        %v402 = vunpack.c.l.b16 %v392
        %v403 = vunpack.c.l.b16 %v393
        %v404 = vpack.c.b16 %v400, %v399
        %v405 = vpack.c.b16 %v402, %v401
        %v406 = vpack.c.b16 %v403, %v403
        %v411 = vunpack.c.l.b16 %v309
        %v412 = vunpack.c.h.b16 %v309
        %v413 = vunpack.c.l.b16 %v310
        %v414 = vunpack.c.h.b16 %v310
        %v415 = vunpack.c.l.b16 %v311
        %v416 = vunpack.c.h.b16 %v311
        %v417 = vunpack.c.l.b16 %v312
        %v418 = vunpack.c.h.b16 %v312
        %v419 = vpack.c.b16 %v413, %v411
        %v420 = vpack.c.b16 %v414, %v412
        %v421 = vpack.c.b16 %v417, %v415
        %v422 = vpack.c.b16 %v418, %v416
        %v428 = vsel %vm333, %v404, 0
        %v431 = vsel %vm333, %v405, 0
        %v434 = vsel %vm333, %v406, 0
        %436 = vmatprep.subr.bf16.mxu0 %v420
        %437 = vmatpush1.bf16.msra.mxu0 %v419
        %438 = vmatprep.subr.bf16.mxu0 %v422
        %439 = vmatpush1.bf16.msra.mxu0 %v421
        %440 = vmatprep.subr.bf16.mxu0 0
        %441 = vmatpush1.bf16.msra.mxu0 0
        %442 = vmatprep.subr.bf16.mxu0 0
        %443 = vmatpush1.bf16.msra.mxu0 0
        %444 = vmatprep.subr.bf16.mxu0 0
        %445 = vmatpush1.bf16.msra.mxu0 0
        %446 = vmatprep.subr.bf16.mxu0 0
        %447 = vmatpush1.bf16.msra.mxu0 0
        %448 = vmatprep.subr.bf16.mxu0 0
        %449 = vmatpush1.bf16.msra.mxu0 0
        %450 = vmatprep.subr.bf16.mxu0 0
        %451 = vmatpush1.bf16.msra.mxu0 0
        %452 = vmatprep.subr.bf16.mxu0 0
        %453 = vmatpush1.bf16.msra.mxu0 0
        %454 = vmatprep.subr.bf16.mxu0 0
        %455 = vmatpush1.bf16.msra.mxu0 0
        %456 = vmatprep.subr.bf16.mxu0 0
        %457 = vmatpush1.bf16.msra.mxu0 0
        %458 = vmatprep.subr.bf16.mxu0 0
        %459 = vmatpush1.bf16.msra.mxu0 0
        %460 = vmatprep.subr.bf16.mxu0 0
        %461 = vmatpush1.bf16.msra.mxu0 0
        %462 = vmatprep.subr.bf16.mxu0 0
        %463 = vmatpush1.bf16.msra.mxu0 0
        %464 = vmatprep.subr.bf16.mxu0 0
        %465 = vmatpush1.bf16.msra.mxu0 0
        %466 = vmatprep.subr.bf16.mxu0 0
        %467 = vmatpush1.bf16.msra.mxu0 0
        %468 = vmatprep.mubr.bf16.mxu0 0
        %469 = vmatmul.mubr.bf16.gmra.mrb[0].mxu0 %v428
        %v470 = vpop.f32.mrb[0].mxu0
        %v471 = vadd.f32 0.0, %v470
        %v472 = vpop.f32.mrb[0].mxu0
        %v473 = vadd.f32 0.0, %v472
        %v474 = vpop.f32.mrb[0].mxu0
        %v475 = vadd.f32 0.0, %v474
        %v476 = vpop.f32.mrb[0].mxu0
        %v477 = vadd.f32 0.0, %v476
        %478 = vmatprep.mubr.bf16.mxu0 0
        %479 = vmatmul.mubr.bf16.gmra.mrb[0].mxu0 %v431
        %v480 = vpop.f32.mrb[0].mxu0
        %v481 = vadd.f32 0.0, %v480
        %v482 = vpop.f32.mrb[0].mxu0
        %v483 = vadd.f32 0.0, %v482
        %v484 = vpop.f32.mrb[0].mxu0
        %v485 = vadd.f32 0.0, %v484
        %v486 = vpop.f32.mrb[0].mxu0
        %v487 = vadd.f32 0.0, %v486
        %488 = vmatprep.mubr.bf16.mxu0 0
        %489 = vmatmul.mubr.bf16.gmra.mrb[0].mxu0 %v434
        %v490 = vpop.f32.mrb[0].mxu0
        %v491 = vadd.f32 0.0, %v490
        %v492 = vpop.f32.mrb[0].mxu0
        %v493 = vadd.f32 0.0, %v492
        %v494 = vpop.f32.mrb[0].mxu0
        %v495 = vpop.f32.mrb[0].mxu0
        %496 = vdwg.mxu0
        %v497 = vld [vmem:[%s4] sm:$0xff]
        %v498 = vld [vmem:[%s4 + $0x8] sm:$0xff]
        %v499 = vld [vmem:[%s4 + $0x10] sm:$0xff]
        %v500 = vld [vmem:[%s4 + $0x18] sm:$0xff]
        %502 = vset.pattern.permute.xlu0 0
        %503 = vperm.xlu0 %502, %v497
        %v504 = vpop.permute.xlu0 %503
        %507 = vset.pattern.permute.xlu0 0
        %508 = vperm.xlu0 %507, %v498
        %v509 = vpop.permute.xlu0 %508
        %512 = vset.pattern.permute.xlu0 0
        %513 = vperm.xlu0 %512, %v499
        %v514 = vpop.permute.xlu0 %513
        %517 = vset.pattern.permute.xlu0 0
        %518 = vperm.xlu0 %517, %v500
        %v519 = vpop.permute.xlu0 %518
        %v521 = vadd.f32 %v471, %v504
        %v522 = vadd.f32 %v473, %v504
        %v523 = vadd.f32 %v475, %v509
        %v524 = vadd.f32 %v477, %v509
        %v525 = vadd.f32 %v481, %v514
        %v526 = vadd.f32 %v483, %v514
        %v527 = vadd.f32 %v485, %v519
        %v528 = vadd.f32 %v487, %v519
        %v529 = vpack.c.bf16 %v523, %v521
        %v530 = vpack.c.bf16 %v524, %v522
        %v531 = vpack.c.bf16 %v527, %v525
        %v532 = vpack.c.bf16 %v528, %v526
        %v533 = vpack.c.bf16 %v378, %v375
        %v534 = vpack.c.bf16 %v386, %v383
        %v535 = vlaneseq
        %v536 = vshrl.u32 %v535, 7
        %v537 = vsub.s32 0, %v536
        %v538 = vrot.slane %v491, %v537
        %v539 = vlaneseq
        %v540 = vshrl.u32 %v539, 7
        %v541 = vsub.s32 0, %v540
        %v542 = vrot.slane %v493, %v541
        %543 = vxpose.xlu0.c.b16.start [1/8] %v533, 128
        %544 = vxpose.xlu0.c.b16.cont [2/8] %v534, 128
        %545 = vxpose.xlu0.c.b16.cont [3/8] 0, 128
        %546 = vxpose.xlu0.c.b16.cont [4/8] 0, 128
        %547 = vxpose.xlu0.c.b16.cont [5/8] 0, 128
        %548 = vxpose.xlu0.c.b16.cont [6/8] 0, 128
        %549 = vxpose.xlu0.c.b16.cont [7/8] 0, 128
        %550 = vxpose.xlu0.c.b16.end [8/8] 0, 128
        %v551 = vpop.trf.xlu0
        %v552 = vpop.trf.xlu0
        %v553 = vpop.trf.xlu0
        %v554 = vpop.trf.xlu0
        %v555 = vpop.trf.xlu0
        %v556 = vpop.trf.xlu0
        %v557 = vpop.trf.xlu0
        %v558 = vpop.trf.xlu0
        %v560 = vsel %vm333, %v551, 0
        %v563 = vsel %vm333, %v552, 0
        %v566 = vsel %vm333, %v553, 0
        %v569 = vsel %vm333, %v554, 0
        %v572 = vsel %vm333, %v555, 0
        %v575 = vsel %vm333, %v556, 0
        %v578 = vsel %vm333, %v557, 0
        %v581 = vsel %vm333, %v558, 0
        %583 = vmatprep.subr.bf16.mxu0 %v420
        %584 = vmatpush1.bf16.msra.mxu0 %v419
        %585 = vmatprep.subr.bf16.mxu0 %v422
        %586 = vmatpush1.bf16.msra.mxu0 %v421
        %587 = vmatprep.subr.bf16.mxu0 0
        %588 = vmatpush1.bf16.msra.mxu0 0
        %589 = vmatprep.subr.bf16.mxu0 0
        %590 = vmatpush1.bf16.msra.mxu0 0
        %591 = vmatprep.subr.bf16.mxu0 0
        %592 = vmatpush1.bf16.msra.mxu0 0
        %593 = vmatprep.subr.bf16.mxu0 0
        %594 = vmatpush1.bf16.msra.mxu0 0
        %595 = vmatprep.subr.bf16.mxu0 0
        %596 = vmatpush1.bf16.msra.mxu0 0
        %597 = vmatprep.subr.bf16.mxu0 0
        %598 = vmatpush1.bf16.msra.mxu0 0
        %599 = vmatprep.subr.bf16.mxu0 0
        %600 = vmatpush1.bf16.msra.mxu0 0
        %601 = vmatprep.subr.bf16.mxu0 0
        %602 = vmatpush1.bf16.msra.mxu0 0
        %603 = vmatprep.subr.bf16.mxu0 0
        %604 = vmatpush1.bf16.msra.mxu0 0
        %605 = vmatprep.subr.bf16.mxu0 0
        %606 = vmatpush1.bf16.msra.mxu0 0
        %607 = vmatprep.subr.bf16.mxu0 0
        %608 = vmatpush1.bf16.msra.mxu0 0
        %609 = vmatprep.subr.bf16.mxu0 0
        %610 = vmatpush1.bf16.msra.mxu0 0
        %611 = vmatprep.subr.bf16.mxu0 0
        %612 = vmatpush1.bf16.msra.mxu0 0
        %613 = vmatprep.subr.bf16.mxu0 0
        %614 = vmatpush1.bf16.msra.mxu0 0
        %615 = vmatprep.mubr.bf16.mxu0 0
        %616 = vmatmul.mubr.bf16.gmra.mrb[0].mxu0 %v560
        %v617 = vpop.f32.mrb[0].mxu0
        %v618 = vadd.f32 %v538, %v617
        %v619 = vpop.f32.mrb[0].mxu0
        %v620 = vadd.f32 %v542, %v619
        %v621 = vpop.f32.mrb[0].mxu0
        %v622 = vadd.f32 %v538, %v621
        %v623 = vpop.f32.mrb[0].mxu0
        %v624 = vadd.f32 %v542, %v623
        %625 = vmatprep.mubr.bf16.mxu0 0
        %626 = vmatmul.mubr.bf16.gmra.mrb[0].mxu0 %v563
        %v627 = vpop.f32.mrb[0].mxu0
        %v628 = vadd.f32 %v538, %v627
        %v629 = vpop.f32.mrb[0].mxu0
        %v630 = vadd.f32 %v542, %v629
        %v631 = vpop.f32.mrb[0].mxu0
        %v632 = vadd.f32 %v538, %v631
        %v633 = vpop.f32.mrb[0].mxu0
        %v634 = vadd.f32 %v542, %v633
        %635 = vmatprep.mubr.bf16.mxu0 0
        %636 = vmatmul.mubr.bf16.gmra.mrb[0].mxu0 %v566
        %v637 = vpop.f32.mrb[0].mxu0
        %v638 = vadd.f32 %v538, %v637
        %v639 = vpop.f32.mrb[0].mxu0
        %v640 = vadd.f32 %v542, %v639
        %v641 = vpop.f32.mrb[0].mxu0
        %v642 = vadd.f32 %v538, %v641
        %v643 = vpop.f32.mrb[0].mxu0
        %v644 = vadd.f32 %v542, %v643
        %645 = vmatprep.mubr.bf16.mxu0 0
        %646 = vmatmul.mubr.bf16.gmra.mrb[0].mxu0 %v569
        %v647 = vpop.f32.mrb[0].mxu0
        %v648 = vadd.f32 %v538, %v647
        %v649 = vpop.f32.mrb[0].mxu0
        %v650 = vadd.f32 %v542, %v649
        %v651 = vpop.f32.mrb[0].mxu0
        %v652 = vadd.f32 %v538, %v651
        %v653 = vpop.f32.mrb[0].mxu0
        %v654 = vadd.f32 %v542, %v653
        %655 = vmatprep.mubr.bf16.mxu0 0
        %656 = vmatmul.mubr.bf16.gmra.mrb[0].mxu0 %v572
        %v657 = vpop.f32.mrb[0].mxu0
        %v658 = vadd.f32 %v538, %v657
        %v659 = vpop.f32.mrb[0].mxu0
        %v660 = vadd.f32 %v542, %v659
        %v661 = vpop.f32.mrb[0].mxu0
        %v662 = vadd.f32 %v538, %v661
        %v663 = vpop.f32.mrb[0].mxu0
        %v664 = vadd.f32 %v542, %v663
        %665 = vmatprep.mubr.bf16.mxu0 0
        %666 = vmatmul.mubr.bf16.gmra.mrb[0].mxu0 %v575
        %v667 = vpop.f32.mrb[0].mxu0
        %v668 = vadd.f32 %v538, %v667
        %v669 = vpop.f32.mrb[0].mxu0
        %v670 = vadd.f32 %v542, %v669
        %v671 = vpop.f32.mrb[0].mxu0
        %v672 = vadd.f32 %v538, %v671
        %v673 = vpop.f32.mrb[0].mxu0
        %v674 = vadd.f32 %v542, %v673
        %675 = vmatprep.mubr.bf16.mxu0 0
        %676 = vmatmul.mubr.bf16.gmra.mrb[0].mxu0 %v578
        %v677 = vpop.f32.mrb[0].mxu0
        %v678 = vadd.f32 %v538, %v677
        %v679 = vpop.f32.mrb[0].mxu0
        %v680 = vadd.f32 %v542, %v679
        %v681 = vpop.f32.mrb[0].mxu0
        %v682 = vadd.f32 %v538, %v681
        %v683 = vpop.f32.mrb[0].mxu0
        %v684 = vadd.f32 %v542, %v683
        %685 = vmatprep.mubr.bf16.mxu0 0
        %686 = vmatmul.mubr.bf16.gmra.mrb[0].mxu0 %v581
        %v687 = vpop.f32.mrb[0].mxu0
        %v688 = vadd.f32 %v538, %v687
        %v689 = vpop.f32.mrb[0].mxu0
        %v690 = vadd.f32 %v542, %v689
        %v691 = vpop.f32.mrb[0].mxu0
        %v692 = vadd.f32 %v538, %v691
        %v693 = vpop.f32.mrb[0].mxu0
        %v694 = vadd.f32 %v542, %v693
        %695 = vdwg.mxu0
        %v696 = vmax.f32 %v618, %v620
        %697 = vmax.xlane.f32.xlu0 %v696
        %v698 = vpop.xlane.xlu0 %697
        %v699 = vmax.f32 %v622, %v624
        %700 = vmax.xlane.f32.xlu0 %v699
        %v701 = vpop.xlane.xlu0 %700
        %v702 = vmax.f32 %v628, %v630
        %703 = vmax.xlane.f32.xlu0 %v702
        %v704 = vpop.xlane.xlu0 %703
        %v705 = vmax.f32 %v632, %v634
        %706 = vmax.xlane.f32.xlu0 %v705
        %v707 = vpop.xlane.xlu0 %706
        %v708 = vmax.f32 %v638, %v640
        %709 = vmax.xlane.f32.xlu0 %v708
        %v710 = vpop.xlane.xlu0 %709
        %v711 = vmax.f32 %v642, %v644
        %712 = vmax.xlane.f32.xlu0 %v711
        %v713 = vpop.xlane.xlu0 %712
        %v714 = vmax.f32 %v648, %v650
        %715 = vmax.xlane.f32.xlu0 %v714
        %v716 = vpop.xlane.xlu0 %715
        %v717 = vmax.f32 %v652, %v654
        %718 = vmax.xlane.f32.xlu0 %v717
        %v719 = vpop.xlane.xlu0 %718
        %v720 = vmax.f32 %v658, %v660
        %721 = vmax.xlane.f32.xlu0 %v720
        %v722 = vpop.xlane.xlu0 %721
        %v723 = vmax.f32 %v662, %v664
        %724 = vmax.xlane.f32.xlu0 %v723
        %v725 = vpop.xlane.xlu0 %724
        %v726 = vmax.f32 %v668, %v670
        %727 = vmax.xlane.f32.xlu0 %v726
        %v728 = vpop.xlane.xlu0 %727
        %v729 = vmax.f32 %v672, %v674
        %730 = vmax.xlane.f32.xlu0 %v729
        %v731 = vpop.xlane.xlu0 %730
        %v732 = vmax.f32 %v678, %v680
        %733 = vmax.xlane.f32.xlu0 %v732
        %v734 = vpop.xlane.xlu0 %733
        %v735 = vmax.f32 %v682, %v684
        %736 = vmax.xlane.f32.xlu0 %v735
        %v737 = vpop.xlane.xlu0 %736
        %v738 = vmax.f32 %v688, %v690
        %739 = vmax.xlane.f32.xlu0 %v738
        %v740 = vpop.xlane.xlu0 %739
        %v741 = vmax.f32 %v692, %v694
        %742 = vmax.xlane.f32.xlu0 %v741
        %v743 = vpop.xlane.xlu0 %742
        %v744 = vsub.f32 %v618, %v698
        %v745 = vsub.f32 %v620, %v698
        %v746 = vsub.f32 %v622, %v701
        %v747 = vsub.f32 %v624, %v701
        %v748 = vsub.f32 %v628, %v704
        %v749 = vsub.f32 %v630, %v704
        %v750 = vsub.f32 %v632, %v707
        %v751 = vsub.f32 %v634, %v707
        %v752 = vsub.f32 %v638, %v710
        %v753 = vsub.f32 %v640, %v710
        %v754 = vsub.f32 %v642, %v713
        %v755 = vsub.f32 %v644, %v713
        %v756 = vsub.f32 %v648, %v716
        %v757 = vsub.f32 %v650, %v716
        %v758 = vsub.f32 %v652, %v719
        %v759 = vsub.f32 %v654, %v719
        %v760 = vsub.f32 %v658, %v722
        %v761 = vsub.f32 %v660, %v722
        %v762 = vsub.f32 %v662, %v725
        %v763 = vsub.f32 %v664, %v725
        %v764 = vsub.f32 %v668, %v728
        %v765 = vsub.f32 %v670, %v728
        %v766 = vsub.f32 %v672, %v731
        %v767 = vsub.f32 %v674, %v731
        %v768 = vsub.f32 %v678, %v734
        %v769 = vsub.f32 %v680, %v734
        %v770 = vsub.f32 %v682, %v737
        %v771 = vsub.f32 %v684, %v737
        %v772 = vsub.f32 %v688, %v740
        %v773 = vsub.f32 %v690, %v740
        %v774 = vsub.f32 %v692, %v743
        %v775 = vsub.f32 %v694, %v743
        %v776 = vmul.f32 %v744, 1.442695
        %v777 = vpow.pop %v776
        %v778 = vmul.f32 %v745, 1.442695
        %v779 = vpow.pop %v778
        %v780 = vmul.f32 %v746, 1.442695
        %v781 = vpow.pop %v780
        %v782 = vmul.f32 %v747, 1.442695
        %v783 = vpow.pop %v782
        %v784 = vmul.f32 %v748, 1.442695
        %v785 = vpow.pop %v784
        %v786 = vmul.f32 %v749, 1.442695
        %v787 = vpow.pop %v786
        %v788 = vmul.f32 %v750, 1.442695
        %v789 = vpow.pop %v788
        %v790 = vmul.f32 %v751, 1.442695
        %v791 = vpow.pop %v790
        %v792 = vmul.f32 %v752, 1.442695
        %v793 = vpow.pop %v792
        %v794 = vmul.f32 %v753, 1.442695
        %v795 = vpow.pop %v794
        %v796 = vmul.f32 %v754, 1.442695
        %v797 = vpow.pop %v796
        %v798 = vmul.f32 %v755, 1.442695
        %v799 = vpow.pop %v798
        %v800 = vmul.f32 %v756, 1.442695
        %v801 = vpow.pop %v800
        %v802 = vmul.f32 %v757, 1.442695
        %v803 = vpow.pop %v802
        %v804 = vmul.f32 %v758, 1.442695
        %v805 = vpow.pop %v804
        %v806 = vmul.f32 %v759, 1.442695
        %v807 = vpow.pop %v806
        %v808 = vmul.f32 %v760, 1.442695
        %v809 = vpow.pop %v808
        %v810 = vmul.f32 %v761, 1.442695
        %v811 = vpow.pop %v810
        %v812 = vmul.f32 %v762, 1.442695
        %v813 = vpow.pop %v812
        %v814 = vmul.f32 %v763, 1.442695
        %v815 = vpow.pop %v814
        %v816 = vmul.f32 %v764, 1.442695
        %v817 = vpow.pop %v816
        %v818 = vmul.f32 %v765, 1.442695
        %v819 = vpow.pop %v818
        %v820 = vmul.f32 %v766, 1.442695
        %v821 = vpow.pop %v820
        %v822 = vmul.f32 %v767, 1.442695
        %v823 = vpow.pop %v822
        %v824 = vmul.f32 %v768, 1.442695
        %v825 = vpow.pop %v824
        %v826 = vmul.f32 %v769, 1.442695
        %v827 = vpow.pop %v826
        %v828 = vmul.f32 %v770, 1.442695
        %v829 = vpow.pop %v828
        %v830 = vmul.f32 %v771, 1.442695
        %v831 = vpow.pop %v830
        %v832 = vmul.f32 %v772, 1.442695
        %v833 = vpow.pop %v832
        %v834 = vmul.f32 %v773, 1.442695
        %v835 = vpow.pop %v834
        %v836 = vmul.f32 %v774, 1.442695
        %v837 = vpow.pop %v836
        %v838 = vmul.f32 %v775, 1.442695
        %v839 = vpow.pop %v838
        %v840 = vadd.f32 %v777, %v779
        %841 = vadd.xlane.f32.xlu0 %v840
        %v842 = vpop.xlane.xlu0 %841
        %v843 = vadd.f32 %v781, %v783
        %844 = vadd.xlane.f32.xlu0 %v843
        %v845 = vpop.xlane.xlu0 %844
        %v846 = vadd.f32 %v785, %v787
        %847 = vadd.xlane.f32.xlu0 %v846
        %v848 = vpop.xlane.xlu0 %847
        %v849 = vadd.f32 %v789, %v791
        %850 = vadd.xlane.f32.xlu0 %v849
        %v851 = vpop.xlane.xlu0 %850
        %v852 = vadd.f32 %v793, %v795
        %853 = vadd.xlane.f32.xlu0 %v852
        %v854 = vpop.xlane.xlu0 %853
        %v855 = vadd.f32 %v797, %v799
        %856 = vadd.xlane.f32.xlu0 %v855
        %v857 = vpop.xlane.xlu0 %856
        %v858 = vadd.f32 %v801, %v803
        %859 = vadd.xlane.f32.xlu0 %v858
        %v860 = vpop.xlane.xlu0 %859
        %v861 = vadd.f32 %v805, %v807
        %862 = vadd.xlane.f32.xlu0 %v861
        %v863 = vpop.xlane.xlu0 %862
        %v864 = vadd.f32 %v809, %v811
        %865 = vadd.xlane.f32.xlu0 %v864
        %v866 = vpop.xlane.xlu0 %865
        %v867 = vadd.f32 %v813, %v815
        %868 = vadd.xlane.f32.xlu0 %v867
        %v869 = vpop.xlane.xlu0 %868
        %v870 = vadd.f32 %v817, %v819
        %871 = vadd.xlane.f32.xlu0 %v870
        %v872 = vpop.xlane.xlu0 %871
        %v873 = vadd.f32 %v821, %v823
        %874 = vadd.xlane.f32.xlu0 %v873
        %v875 = vpop.xlane.xlu0 %874
        %v876 = vadd.f32 %v825, %v827
        %877 = vadd.xlane.f32.xlu0 %v876
        %v878 = vpop.xlane.xlu0 %877
        %v879 = vadd.f32 %v829, %v831
        %880 = vadd.xlane.f32.xlu0 %v879
        %v881 = vpop.xlane.xlu0 %880
        %v882 = vadd.f32 %v833, %v835
        %883 = vadd.xlane.f32.xlu0 %v882
        %v884 = vpop.xlane.xlu0 %883
        %v885 = vadd.f32 %v837, %v839
        %886 = vadd.xlane.f32.xlu0 %v885
        %v887 = vpop.xlane.xlu0 %886
        %v888 = vrcp.pop %v842
        %v889 = vrcp.pop %v845
        %v890 = vrcp.pop %v848
        %v891 = vrcp.pop %v851
        %v892 = vrcp.pop %v854
        %v893 = vrcp.pop %v857
        %v894 = vrcp.pop %v860
        %v895 = vrcp.pop %v863
        %v896 = vrcp.pop %v866
        %v897 = vrcp.pop %v869
        %v898 = vrcp.pop %v872
        %v899 = vrcp.pop %v875
        %v900 = vrcp.pop %v878
        %v901 = vrcp.pop %v881
        %v902 = vrcp.pop %v884
        %v903 = vrcp.pop %v887
        %v904 = vmul.f32 %v777, %v888
        %v905 = vmul.f32 %v779, %v888
        %v906 = vmul.f32 %v781, %v889
        %v907 = vmul.f32 %v783, %v889
        %v908 = vmul.f32 %v785, %v890
        %v909 = vmul.f32 %v787, %v890
        %v910 = vmul.f32 %v789, %v891
        %v911 = vmul.f32 %v791, %v891
        %v912 = vmul.f32 %v793, %v892
        %v913 = vmul.f32 %v795, %v892
        %v914 = vmul.f32 %v797, %v893
        %v915 = vmul.f32 %v799, %v893
        %v916 = vmul.f32 %v801, %v894
        %v917 = vmul.f32 %v803, %v894
        %v918 = vmul.f32 %v805, %v895
        %v919 = vmul.f32 %v807, %v895
        %v920 = vmul.f32 %v809, %v896
        %v921 = vmul.f32 %v811, %v896
        %v922 = vmul.f32 %v813, %v897
        %v923 = vmul.f32 %v815, %v897
        %v924 = vmul.f32 %v817, %v898
        %v925 = vmul.f32 %v819, %v898
        %v926 = vmul.f32 %v821, %v899
        %v927 = vmul.f32 %v823, %v899
        %v928 = vmul.f32 %v825, %v900
        %v929 = vmul.f32 %v827, %v900
        %v930 = vmul.f32 %v829, %v901
        %v931 = vmul.f32 %v831, %v901
        %v932 = vmul.f32 %v833, %v902
        %v933 = vmul.f32 %v835, %v902
        %v934 = vmul.f32 %v837, %v903
        %v935 = vmul.f32 %v839, %v903
        %v936 = vpack.c.bf16 %v906, %v904
        %v937 = vpack.c.bf16 %v907, %v905
        %v938 = vpack.c.bf16 %v910, %v908
        %v939 = vpack.c.bf16 %v911, %v909
        %v940 = vpack.c.bf16 %v914, %v912
        %v941 = vpack.c.bf16 %v915, %v913
        %v942 = vpack.c.bf16 %v918, %v916
        %v943 = vpack.c.bf16 %v919, %v917
        %v944 = vpack.c.bf16 %v922, %v920
        %v945 = vpack.c.bf16 %v923, %v921
        %v946 = vpack.c.bf16 %v926, %v924
        %v947 = vpack.c.bf16 %v927, %v925
        %v948 = vpack.c.bf16 %v930, %v928
        %v949 = vpack.c.bf16 %v931, %v929
        %v950 = vpack.c.bf16 %v934, %v932
        %v951 = vpack.c.bf16 %v935, %v933
        %952 = vmatprep.subr.bf16.mxu0 %v937
        %953 = vmatpush1.bf16.xpose.msra.mxu0 %v936
        %954 = vmatprep.subr.bf16.mxu0 %v939
        %955 = vmatpush1.bf16.xpose.msra.mxu0 %v938
        %956 = vmatprep.subr.bf16.mxu0 %v941
        %957 = vmatpush1.bf16.xpose.msra.mxu0 %v940
        %958 = vmatprep.subr.bf16.mxu0 %v943
        %959 = vmatpush1.bf16.xpose.msra.mxu0 %v942
        %960 = vmatprep.subr.bf16.mxu0 %v945
        %961 = vmatpush1.bf16.xpose.msra.mxu0 %v944
        %962 = vmatprep.subr.bf16.mxu0 %v947
        %963 = vmatpush1.bf16.xpose.msra.mxu0 %v946
        %964 = vmatprep.subr.bf16.mxu0 %v949
        %965 = vmatpush1.bf16.xpose.msra.mxu0 %v948
        %966 = vmatprep.subr.bf16.mxu0 %v951
        %967 = vmatpush1.bf16.xpose.msra.mxu0 %v950
        %968 = vmatprep.subr.bf16.mxu0 0
        %969 = vmatpush1.bf16.xpose.msra.mxu0 0
        %970 = vmatprep.subr.bf16.mxu0 0
        %971 = vmatpush1.bf16.xpose.msra.mxu0 0
        %972 = vmatprep.subr.bf16.mxu0 0
        %973 = vmatpush1.bf16.xpose.msra.mxu0 0
        %974 = vmatprep.subr.bf16.mxu0 0
        %975 = vmatpush1.bf16.xpose.msra.mxu0 0
        %976 = vmatprep.subr.bf16.mxu0 0
        %977 = vmatpush1.bf16.xpose.msra.mxu0 0
        %978 = vmatprep.subr.bf16.mxu0 0
        %979 = vmatpush1.bf16.xpose.msra.mxu0 0
        %980 = vmatprep.subr.bf16.mxu0 0
        %981 = vmatpush1.bf16.xpose.msra.mxu0 0
        %982 = vmatprep.subr.bf16.mxu0 0
        %983 = vmatpush1.bf16.xpose.msra.mxu0 0
        %984 = vmatprep.mubr.bf16.mxu0 %v530
        %985 = vmatmul.mubr.bf16.gmra.mrb[0].mxu0 %v529
        %v986 = vpop.f32.mrb[0].mxu0
        %v987 = vadd.f32 0.0, %v986
        %v988 = vpop.f32.mrb[0].mxu0
        %v989 = vpop.f32.mrb[0].mxu0
        %v990 = vadd.f32 0.0, %v989
        %v991 = vpop.f32.mrb[0].mxu0
        %992 = vmatprep.mubr.bf16.mxu0 %v532
        %993 = vmatmul.mubr.bf16.gmra.mrb[0].mxu0 %v531
        %v994 = vpop.f32.mrb[0].mxu0
        %v995 = vadd.f32 0.0, %v994
        %v996 = vpop.f32.mrb[0].mxu0
        %v997 = vpop.f32.mrb[0].mxu0
        %v998 = vadd.f32 0.0, %v997
        %v999 = vpop.f32.mrb[0].mxu0
        %1000 = vdwg.mxu0
        %s1001 = sld [smem:[#allocation2]]
        %v1002 = vstv %s1001
        %v1003 = vmul.f32 %v1002, %v987
        %v1004 = vmul.f32 %v1002, %v990
        %v1005 = vmul.f32 %v1002, %v995
        %v1006 = vmul.f32 %v1002, %v998
        %v1007 = vadd.f32 %v1003, %v313
        %v1008 = vadd.f32 %v1004, %v314
        %v1009 = vadd.f32 %v1005, %v315
        %v1010 = vadd.f32 %v1006, %v316
        %1011 = vst [vmem:[%s302] sm:$0xff] %v1007
        %1012 = vst [vmem:[%s302 + $0x8] sm:$0xff] %v1008
        %1013 = vst [vmem:[%s302 + $0x10] sm:$0xff] %v1009
        %1014 = vst [vmem:[%s302 + $0x18] sm:$0xff] %v1010
        %s1015 = sand.u32 %s184, 1
        %s1016 = scalar_lea.sflag [#allocation5], %s1015
        %s1017 = sand.u32 %s184, 1
        %s1018 = smul.addr %s1017, 32
        %s1019 = scalar_lea.vmem [#allocation6], %s1018
        // Predicated region
        $region49: #{tpu_custom_call.1} parent=43 // pred_check
          %p1020 = pneg %p194
        $region50: #{tpu_custom_call.1} parent=43 // pred_check_branch
          %1022 = sbr.rel (%p1020) target = $region52
        $region51: #{tpu_custom_call.1} parent=43 // pred_region
          %s1024 = ssub.s32 512, 512
          %1025 = vsyncadd %s1016, %s1024
          %s1026 = smul.addr %s28, 8
          %s1027 = sadd.s32 %s29, %s1026
          %s1028 = smul.addr %s1027, 128
          %s1029 = scalar_lea.hbm %s6, %s1028
          %s1030 = sshll.u32 %s1019, 4
          %s1031 = int_to_ptr.vmem [resolvable:$true] %s1030
          %1036 = dma.vmem_to_hbm [thread:$0]  %s1031, 512, %s1029, %s1016, 128, 256, 8
        $region52: #{tpu_custom_call.1} parent=43 // pred_fallthru
          _
      $region44: #{tpu_custom_call.1} parent=5 // pred_fallthru
        _
      %p1037 = scmp.le.s32.totalorder 2, %s19
      // Predicated region
      $region53: #{tpu_custom_call.1} parent=5 // pred_check
        %p1038 = pneg %p1037
      $region54: #{tpu_custom_call.1} parent=5 // pred_check_branch
        %1040 = sbr.rel (%p1038) target = $region56
      $region55: #{tpu_custom_call.1} parent=5 // pred_region
        %s1041 = ssub.s32 %s19, 2
        // Predicated region
        $region57: #{tpu_custom_call.1} parent=55 // pred_check
          %p1042 = pneg %p200
        $region58: #{tpu_custom_call.1} parent=55 // pred_check_branch
          %1044 = sbr.rel (%p1042) target = $region60
        $region59: #{tpu_custom_call.1} parent=55 // pred_region
          %s1045 = sand.u32 %s185, 1
          %s1046 = scalar_lea.sflag [#allocation5], %s1045
          %s1047 = sand.u32 %s185, 1
          %s1048 = smul.addr %s1047, 32
          %s1049 = scalar_lea.vmem [#allocation6], %s1048
          %1050 = dma.done %s1046, 512
        $region60: #{tpu_custom_call.1} parent=55 // pred_fallthru
          _
      $region56: #{tpu_custom_call.1} parent=5 // pred_fallthru
        _
    $region6: #{tpu_custom_call.1} parent=1 // loop_footer
      %s23 = sadd.s32 1, %s19
    $region7: #{tpu_custom_call.1} parent=1 // loop_footer_branch
      %18 = sbr.rel target = $region3
    $region8: #{tpu_custom_call.1} parent=1 // loop_exit
      _
    %1051 = vsyncpa [#allocation4], 1
    %s1052 = scalar_lea.sflag [#allocation4], 1
    %1053 = vsyncpa %s1052, 1
    %1054 = vsyncpa [#allocation5], 1
    %s1055 = scalar_lea.sflag [#allocation5], 1
    %1056 = vsyncpa %s1055, 1

</llo_original>
